<compile_context>
chip_gen: v5e
topology: v5e:2x2
jax: 0.10.0
libtpu: 0.0.40
codegen_flags: <defaults>
</compile_context>

<pallas_src>
import functools

import jax
import jax.numpy as jnp
from jax import lax
from jax.experimental import pallas as pl
from jax.experimental.pallas import tpu as pltpu


def _cluster_assignment_kernel(x_ref, c_ref, csq_ref, out_ref, *, alpha):
    # x_ref:   [TB, D]  batch tile (pipelined)
    # c_ref:   [Kp, D]  padded cluster centers (resident)
    # csq_ref: [1, Kp]  padded ||c||^2 (padding columns hold 1e30, resident)
    # out_ref: [TB, Kp] soft assignments for this batch tile
    x = x_ref[...].astype(jnp.float32)
    c = c_ref[...].astype(jnp.float32)
    c_sq = csq_ref[...]                                        # [1, Kp]

    x_sq = jnp.sum(x * x, axis=-1, keepdims=True)              # [TB, 1]

    # Contract on D directly; MXU consumes (TB, D) x (Kp, D) -> (TB, Kp).
    xc = lax.dot_general(
        x, c,
        dimension_numbers=(((1,), (1,)), ((), ())),
        preferred_element_type=jnp.float32,
        precision=lax.Precision.HIGHEST,
    )                                                          # [TB, Kp]

    # Clamp at 0: the expanded form can go slightly negative from cancellation.
    norm_sq = jnp.maximum(x_sq + c_sq - 2.0 * xc, 0.0)         # [TB, Kp]

    # 1/(1 + d/alpha) normalized over K  ==  1/(alpha + d) normalized over K,
    # so the /alpha is folded away (it cancels in the normalization).
    # Padded columns have d ~ 1e30 -> weight ~ 1e-30, negligible in the sum.
    w = pl.reciprocal(alpha + norm_sq, approx=False)           # EUP
    denom = jnp.sum(w, axis=1, keepdims=True)                  # [TB, 1]
    out_ref[...] = (w * pl.reciprocal(denom, approx=False)).astype(out_ref.dtype)


def cluster_assignment(batch, cluster_centers, alpha=1.0, tb_max=1024):
    """Soft cluster assignment (DEC / Student's t, power 1 as in the reference).

    Args:
      batch:            f32[B, D]
      cluster_centers:  f32[K, D]
      alpha:            degrees of freedom (python float, baked into kernel)
      tb_max:           max batch-tile rows (multiple of 8)

    Returns:
      f32[B, K] soft assignments (rows sum to 1).
    """
    B, D = batch.shape
    K, Dc = cluster_centers.shape
    assert D == Dc, "embedding dimension mismatch"

    # Lane-dense output: pad the cluster axis to a multiple of 128.
    Kp = ((K + 127) // 128) * 128
    centers = cluster_centers.astype(jnp.float32)
    centers_p = jnp.pad(centers, ((0, Kp - K), (0, 0))) if Kp != K else centers

    # Hoist center statistics out of the hot loop. Padded columns get a huge
    # squared norm so their t-kernel weight is ~0 and never pollutes row sums.
    c_sq = jnp.sum(centers * centers, axis=-1)                         # [K]
    c_sq_p = jnp.pad(c_sq, (0, Kp - K), constant_values=1e30)[None, :]  # [1, Kp]

    # Tile the batch; keep (padded) centers resident across grid steps.
    # VMEM/step ~ 2*(TB*D + TB*Kp)*4 + 2*Kp*D*4 bytes -- comfortably under the
    # 32 MiB scoped default on v5e/v6e/v7x for tb_max=1024 at typical D/K.
    if B <= tb_max:
        TB, Bp = B, B
        x_p = batch.astype(jnp.float32)
    else:
        TB = tb_max                              # multiple of 8
        Bp = pl.cdiv(B, TB) * TB
        x_p = jnp.pad(batch.astype(jnp.float32), ((0, Bp - B), (0, 0)))

    kernel = functools.partial(_cluster_assignment_kernel, alpha=float(alpha))

    out = pl.pallas_call(
        kernel,
        out_shape=jax.ShapeDtypeStruct((Bp, Kp), jnp.float32),
        grid_spec=pltpu.PrefetchScalarGridSpec(
            num_scalar_prefetch=0,
            grid=(Bp // TB,),
            in_specs=[
                pl.BlockSpec((TB, D), lambda i: (i, 0)),   # batch tile (pipelined)
                pl.BlockSpec((Kp, D), lambda i: (0, 0)),   # centers (resident)
                pl.BlockSpec((1, Kp), lambda i: (0, 0)),   # ||c||^2 (resident)
            ],
            out_specs=pl.BlockSpec((TB, Kp), lambda i: (i, 0)),
        ),
        compiler_params=pltpu.CompilerParams(
            # batch tiles are independent -> shard across v7x's 2 TensorCores
            dimension_semantics=("parallel",),
        ),
    )(x_p, centers_p, c_sq_p)

    return out[:B, :K]


def xavier_uniform(key, shape, dtype=jnp.float32):
    """Deterministic Xavier/Glorot uniform init matching nn.init.xavier_uniform_."""
    fan_out, fan_in = shape  # torch treats dim0 as fan_out, dim1 as fan_in for 2D
    bound = jnp.sqrt(6.0 / (fan_in + fan_out))
    return jax.random.uniform(key, shape, dtype, minval=-bound, maxval=bound)


if __name__ == "__main__":
    # Small, deterministic example consistent with the module's forward:
    #   batch: [batch_size, embedding_dimension]
    batch_size = 8
    embedding_dimension = 32
    cluster_number = 16
    alpha = 1.0  # NOTE: reference forward uses power 1 regardless of alpha.

    key = jax.random.PRNGKey(0)
    k_batch, k_centers = jax.random.split(key)

    batch = jax.random.normal(k_batch, (batch_size, embedding_dimension),
                              dtype=jnp.float32)
    # cluster_centers=None in the module => Xavier-uniform init of [K, D].
    cluster_centers = xavier_uniform(k_centers,
                                     (cluster_number, embedding_dimension))

    out = cluster_assignment(batch, cluster_centers, alpha=alpha)
    out = jax.block_until_ready(out)

    # Pure-JAX reference mirroring the PyTorch broadcast/sum forward.
    diff = batch[:, None, :] - cluster_centers[None, :, :]
    norm_sq_ref = jnp.sum(diff * diff, axis=2)
    num_ref = 1.0 / (1.0 + norm_sq_ref / alpha)
    ref = num_ref / jnp.sum(num_ref, axis=1, keepdims=True)

    assert out.shape == (batch_size, cluster_number)
    assert jnp.allclose(jnp.sum(out, axis=1), 1.0, atol=1e-5)
    assert jnp.allclose(out, ref, atol=1e-4, rtol=1e-4)

    print("KERNEL_OK")
</pallas_src>

<mosaic_0001>
module attributes {stable_mosaic.version = 11 : i64} {
  func.func @_cluster_assignment_kernel(%arg0: i32, %arg1: memref<8x32xf32, #tpu.memory_space<vmem>>, %arg2: memref<128x32xf32, #tpu.memory_space<vmem>>, %arg3: memref<1x128xf32, #tpu.memory_space<vmem>>, %arg4: memref<8x128xf32, #tpu.memory_space<vmem>>) attributes {dimension_semantics = [#tpu.dimension_semantics<parallel>], iteration_bounds = array<i64: 1>, scalar_prefetch = 0 : i64, scratch_operands = 0 : i64, tpu.core_type = #tpu.core_type<tc>, window_params = [{transform_indices = @transform_0, window_bounds = array<i64: 8, 32>}, {pipeline_mode = #tpu.pipeline_mode<synchronous>, transform_indices = @transform_1, window_bounds = array<i64: 128, 32>}, {pipeline_mode = #tpu.pipeline_mode<synchronous>, transform_indices = @transform_2, window_bounds = array<i64: 1, 128>}, {transform_indices = @transform_3, window_bounds = array<i64: 8, 128>}]} {
    %c0 = arith.constant 0 : index
    %c0_0 = arith.constant 0 : index
    %0 = vector.load %arg1[%c0, %c0_0] : memref<8x32xf32, #tpu.memory_space<vmem>>, vector<8x32xf32>
    %c0_1 = arith.constant 0 : index
    %c0_2 = arith.constant 0 : index
    %1 = vector.load %arg2[%c0_1, %c0_2] : memref<128x32xf32, #tpu.memory_space<vmem>>, vector<128x32xf32>
    %c0_3 = arith.constant 0 : index
    %c0_4 = arith.constant 0 : index
    %2 = vector.load %arg3[%c0_3, %c0_4] : memref<1x128xf32, #tpu.memory_space<vmem>>, vector<1x128xf32>
    %3 = arith.mulf %0, %0 : vector<8x32xf32>
    %cst = arith.constant dense<0.000000e+00> : vector<8xf32>
    %4 = vector.multi_reduction <add>, %3, %cst [1] : vector<8x32xf32> to vector<8xf32>
    %5 = vector.shape_cast %4 : vector<8xf32> to vector<8x1xf32>
    %cst_5 = arith.constant dense<0.000000e+00> : vector<8x128xf32>
    %6 = tpu.matmul %0, %1, %cst_5 {dimension_numbers = #tpu.dot_dimension_numbers<[1], [1], [0], [0], [0, 0, 1, 0], [], []>, precision = #tpu.contract_precision<fp32>} : vector<8x32xf32>, vector<128x32xf32>, vector<8x128xf32> -> vector<8x128xf32>
    %7 = vector.broadcast %5 : vector<8x1xf32> to vector<8x128xf32>
    %8 = vector.broadcast %2 : vector<1x128xf32> to vector<8x128xf32>
    %9 = arith.addf %7, %8 : vector<8x128xf32>
    %cst_6 = arith.constant 2.000000e+00 : f32
    %10 = vector.broadcast %cst_6 : f32 to vector<8x128xf32>
    %11 = arith.mulf %10, %6 : vector<8x128xf32>
    %12 = arith.subf %9, %11 : vector<8x128xf32>
    %cst_7 = arith.constant 0.000000e+00 : f32
    %13 = vector.broadcast %cst_7 : f32 to vector<8x128xf32>
    %14 = arith.maximumf %12, %13 : vector<8x128xf32>
    %cst_8 = arith.constant 1.000000e+00 : f32
    %15 = vector.broadcast %cst_8 : f32 to vector<8x128xf32>
    %16 = arith.addf %15, %14 : vector<8x128xf32>
    %17 = tpu.reciprocal %16 : vector<8x128xf32> -> vector<8x128xf32>
    %cst_9 = arith.constant dense<0.000000e+00> : vector<8xf32>
    %18 = vector.multi_reduction <add>, %17, %cst_9 [1] : vector<8x128xf32> to vector<8xf32>
    %19 = vector.shape_cast %18 : vector<8xf32> to vector<8x1xf32>
    %20 = tpu.reciprocal %19 : vector<8x1xf32> -> vector<8x1xf32>
    %21 = vector.broadcast %20 : vector<8x1xf32> to vector<8x128xf32>
    %22 = arith.mulf %17, %21 : vector<8x128xf32>
    %c0_10 = arith.constant 0 : index
    %c0_11 = arith.constant 0 : index
    %23 = vector.load %arg4[%c0_10, %c0_11] : memref<8x128xf32, #tpu.memory_space<vmem>>, vector<8x128xf32>
    tpu.vector_store %arg4[%c0_10, %c0_11], %22 {strides = array<i32>} : memref<8x128xf32, #tpu.memory_space<vmem>>, vector<8x128xf32>,
    return
  }
  func.func @transform_0(%arg0: i32) -> (i32, i32) {
    %c0_i32 = arith.constant 0 : i32
    %c0_i32_0 = arith.constant 0 : i32
    return %arg0, %c0_i32 : i32, i32
  }
  func.func @transform_1(%arg0: i32) -> (i32, i32) {
    %c0_i32 = arith.constant 0 : i32
    %c0_i32_0 = arith.constant 0 : i32
    %c0_i32_1 = arith.constant 0 : i32
    return %c0_i32, %c0_i32_0 : i32, i32
  }
  func.func @transform_2(%arg0: i32) -> (i32, i32) {
    %c0_i32 = arith.constant 0 : i32
    %c0_i32_0 = arith.constant 0 : i32
    %c0_i32_1 = arith.constant 0 : i32
    return %c0_i32, %c0_i32_0 : i32, i32
  }
  func.func @transform_3(%arg0: i32) -> (i32, i32) {
    %c0_i32 = arith.constant 0 : i32
    %c0_i32_0 = arith.constant 0 : i32
    return %arg0, %c0_i32 : i32, i32
  }
}

</mosaic_0001>

<llo_original>
// kernel: tpu_custom_call.1
$region0: #{tpu_custom_call.1}
  #allocation0 [shape = 'u32[]', space=smem, size = 0x4, offset = 0x4, fixed_abs, tag = 'smem constant byte address 0x4 - core index']
  #allocation1 [shape = 'u32[72,128]{1,0:T(1,128)}', space=vmem, size = 0x9000, scoped, tag = 'internal scratch']
  %s0 = inlined_call_operand.vmem [shape: f32[8,32], index: 0, kind: input, shape index: {}]
  %s1 = inlined_call_operand.vmem [shape: f32[128,32], index: 1, kind: input, shape index: {}]
  %s2 = inlined_call_operand.vmem [shape: f32[1,128], index: 2, kind: input, shape index: {}]
  %s3 = inlined_call_operand.hbm [shape: f32[8,128], index: 3, kind: output, shape index: {}]
  %s4 = sld [smem:[#allocation0]]
  $region22: #{tpu_custom_call.1} parent=0
    _
  %s6 = ssub.s32 1, %s4
  %s7 = scalar_select 0, %s6, %s4
  $region1: #{tpu_custom_call.1} parent=0
    #allocation2 [shape = 'u8[4096]{0}', space=vmem, size = 0x1000, scoped, tag = 'output window, operand 0, single buffered']
    #allocation3 [shape = 's32[1]{0}', space=sflag, size = 0x4, scoped, tag = 'scoped memory for tpu_custom_call.1']
    %8 = vsyncpa [#allocation3], 0
    // Predicated region
    $region2: #{tpu_custom_call.1} parent=1 // pred_check
      _
    $region3: #{tpu_custom_call.1} parent=1 // pred_check_branch
      %10 = sbr.rel (0) target = $region5
    $region4: #{tpu_custom_call.1} parent=1 // pred_region
      _
    $region5: #{tpu_custom_call.1} parent=1 // pred_fallthru
      _
    // Predicated region
    $region6: #{tpu_custom_call.1} parent=1 // pred_check
      _
    $region7: #{tpu_custom_call.1} parent=1 // pred_check_branch
      %12 = sbr.rel (0) target = $region9
    $region8: #{tpu_custom_call.1} parent=1 // pred_region
      _
    $region9: #{tpu_custom_call.1} parent=1 // pred_fallthru
      _
    // Predicated region
    $region10: #{tpu_custom_call.1} parent=1 // pred_check
      _
    $region11: #{tpu_custom_call.1} parent=1 // pred_check_branch
      %14 = sbr.rel (0) target = $region13
    $region12: #{tpu_custom_call.1} parent=1 // pred_region
      _
    $region13: #{tpu_custom_call.1} parent=1 // pred_fallthru
      _
    %v15 = vld [vmem:[%s0] sm:$0xff]
    %v16 = vld [vmem:[%s1] sm:$0xff]
    %v17 = vld [vmem:[%s1 + $0x8] sm:$0xff]
    %v18 = vld [vmem:[%s1 + $0x10] sm:$0xff]
    %v19 = vld [vmem:[%s1 + $0x18] sm:$0xff]
    %v20 = vld [vmem:[%s1 + $0x20] sm:$0xff]
    %v21 = vld [vmem:[%s1 + $0x28] sm:$0xff]
    %v22 = vld [vmem:[%s1 + $0x30] sm:$0xff]
    %v23 = vld [vmem:[%s1 + $0x38] sm:$0xff]
    %v24 = vld [vmem:[%s1 + $0x40] sm:$0xff]
    %v25 = vld [vmem:[%s1 + $0x48] sm:$0xff]
    %v26 = vld [vmem:[%s1 + $0x50] sm:$0xff]
    %v27 = vld [vmem:[%s1 + $0x58] sm:$0xff]
    %v28 = vld [vmem:[%s1 + $0x60] sm:$0xff]
    %v29 = vld [vmem:[%s1 + $0x68] sm:$0xff]
    %v30 = vld [vmem:[%s1 + $0x70] sm:$0xff]
    %v31 = vld [vmem:[%s1 + $0x78] sm:$0xff]
    %v32 = vld [vmem:[%s2] sm:$0x1]
    %v33 = vmul.f32 %v15, %v15
    %vm34 = vcmask 261120
    %v35 = vsel %vm34, %v33, 0.0
    %36 = vadd.xlane.f32.xlu0 %v35
    %v37 = vpop.xlane.xlu0 %36
    %v39 = vsel %vm34, %v15, 0
    %v42 = vsel %vm34, %v16, 0
    %v45 = vsel %vm34, %v17, 0
    %v48 = vsel %vm34, %v18, 0
    %v51 = vsel %vm34, %v19, 0
    %v54 = vsel %vm34, %v20, 0
    %v57 = vsel %vm34, %v21, 0
    %v60 = vsel %vm34, %v22, 0
    %v63 = vsel %vm34, %v23, 0
    %v66 = vsel %vm34, %v24, 0
    %v69 = vsel %vm34, %v25, 0
    %v72 = vsel %vm34, %v26, 0
    %v75 = vsel %vm34, %v27, 0
    %v78 = vsel %vm34, %v28, 0
    %v81 = vsel %vm34, %v29, 0
    %v84 = vsel %vm34, %v30, 0
    %v87 = vsel %vm34, %v31, 0
    %v89 = vand.u32 %v87, 4294901760
    %90 = vmatpush.xpose.msra.mxu0 %v89
    %v91 = vand.u32 %v84, 4294901760
    %92 = vmatpush.xpose.msra.mxu0 %v91
    %v93 = vand.u32 %v81, 4294901760
    %94 = vmatpush.xpose.msra.mxu0 %v93
    %v95 = vand.u32 %v78, 4294901760
    %96 = vmatpush.xpose.msra.mxu0 %v95
    %v97 = vand.u32 %v75, 4294901760
    %98 = vmatpush.xpose.msra.mxu0 %v97
    %v99 = vand.u32 %v72, 4294901760
    %100 = vmatpush.xpose.msra.mxu0 %v99
    %v101 = vand.u32 %v69, 4294901760
    %102 = vmatpush.xpose.msra.mxu0 %v101
    %v103 = vand.u32 %v66, 4294901760
    %104 = vmatpush.xpose.msra.mxu0 %v103
    %v105 = vand.u32 %v63, 4294901760
    %106 = vmatpush.xpose.msra.mxu0 %v105
    %v107 = vand.u32 %v60, 4294901760
    %108 = vmatpush.xpose.msra.mxu0 %v107
    %v109 = vand.u32 %v57, 4294901760
    %110 = vmatpush.xpose.msra.mxu0 %v109
    %v111 = vand.u32 %v54, 4294901760
    %112 = vmatpush.xpose.msra.mxu0 %v111
    %v113 = vand.u32 %v51, 4294901760
    %114 = vmatpush.xpose.msra.mxu0 %v113
    %v115 = vand.u32 %v48, 4294901760
    %116 = vmatpush.xpose.msra.mxu0 %v115
    %v117 = vand.u32 %v45, 4294901760
    %118 = vmatpush.xpose.msra.mxu0 %v117
    %v119 = vand.u32 %v42, 4294901760
    %120 = vmatpush.xpose.msra.mxu0 %v119
    %v121 = vand.u32 %v39, 4294901760
    %v122 = vsub.f32 %v39, %v121
    %v123 = vand.u32 %v122, 4294901760
    %v124 = vsub.f32 %v122, %v123
    %v125 = vand.u32 %v124, 4294901760
    %126 = vmatmul.f32.gmra.mxu0 %v125
    %v127 = vpop.f32.mrf.mxu0
    %v128 = vadd.f32 0.0, %v127
    %129 = vdwg.mxu0
    %v130 = vand.u32 %v87, 4294901760
    %v131 = vsub.f32 %v87, %v130
    %v132 = vand.u32 %v131, 4294901760
    %v133 = vsub.f32 %v131, %v132
    %v134 = vand.u32 %v133, 4294901760
    %135 = vmatpush.xpose.msra.mxu0 %v134
    %v136 = vand.u32 %v84, 4294901760
    %v137 = vsub.f32 %v84, %v136
    %v138 = vand.u32 %v137, 4294901760
    %v139 = vsub.f32 %v137, %v138
    %v140 = vand.u32 %v139, 4294901760
    %141 = vmatpush.xpose.msra.mxu0 %v140
    %v142 = vand.u32 %v81, 4294901760
    %v143 = vsub.f32 %v81, %v142
    %v144 = vand.u32 %v143, 4294901760
    %v145 = vsub.f32 %v143, %v144
    %v146 = vand.u32 %v145, 4294901760
    %147 = vmatpush.xpose.msra.mxu0 %v146
    %v148 = vand.u32 %v78, 4294901760
    %v149 = vsub.f32 %v78, %v148
    %v150 = vand.u32 %v149, 4294901760
    %v151 = vsub.f32 %v149, %v150
    %v152 = vand.u32 %v151, 4294901760
    %153 = vmatpush.xpose.msra.mxu0 %v152
    %v154 = vand.u32 %v75, 4294901760
    %v155 = vsub.f32 %v75, %v154
    %v156 = vand.u32 %v155, 4294901760
    %v157 = vsub.f32 %v155, %v156
    %v158 = vand.u32 %v157, 4294901760
    %159 = vmatpush.xpose.msra.mxu0 %v158
    %v160 = vand.u32 %v72, 4294901760
    %v161 = vsub.f32 %v72, %v160
    %v162 = vand.u32 %v161, 4294901760
    %v163 = vsub.f32 %v161, %v162
    %v164 = vand.u32 %v163, 4294901760
    %165 = vmatpush.xpose.msra.mxu0 %v164
    %v166 = vand.u32 %v69, 4294901760
    %v167 = vsub.f32 %v69, %v166
    %v168 = vand.u32 %v167, 4294901760
    %v169 = vsub.f32 %v167, %v168
    %v170 = vand.u32 %v169, 4294901760
    %171 = vmatpush.xpose.msra.mxu0 %v170
    %v172 = vand.u32 %v66, 4294901760
    %v173 = vsub.f32 %v66, %v172
    %v174 = vand.u32 %v173, 4294901760
    %v175 = vsub.f32 %v173, %v174
    %v176 = vand.u32 %v175, 4294901760
    %177 = vmatpush.xpose.msra.mxu0 %v176
    %v178 = vand.u32 %v63, 4294901760
    %v179 = vsub.f32 %v63, %v178
    %v180 = vand.u32 %v179, 4294901760
    %v181 = vsub.f32 %v179, %v180
    %v182 = vand.u32 %v181, 4294901760
    %183 = vmatpush.xpose.msra.mxu0 %v182
    %v184 = vand.u32 %v60, 4294901760
    %v185 = vsub.f32 %v60, %v184
    %v186 = vand.u32 %v185, 4294901760
    %v187 = vsub.f32 %v185, %v186
    %v188 = vand.u32 %v187, 4294901760
    %189 = vmatpush.xpose.msra.mxu0 %v188
    %v190 = vand.u32 %v57, 4294901760
    %v191 = vsub.f32 %v57, %v190
    %v192 = vand.u32 %v191, 4294901760
    %v193 = vsub.f32 %v191, %v192
    %v194 = vand.u32 %v193, 4294901760
    %195 = vmatpush.xpose.msra.mxu0 %v194
    %v196 = vand.u32 %v54, 4294901760
    %v197 = vsub.f32 %v54, %v196
    %v198 = vand.u32 %v197, 4294901760
    %v199 = vsub.f32 %v197, %v198
    %v200 = vand.u32 %v199, 4294901760
    %201 = vmatpush.xpose.msra.mxu0 %v200
    %v202 = vand.u32 %v51, 4294901760
    %v203 = vsub.f32 %v51, %v202
    %v204 = vand.u32 %v203, 4294901760
    %v205 = vsub.f32 %v203, %v204
    %v206 = vand.u32 %v205, 4294901760
    %207 = vmatpush.xpose.msra.mxu0 %v206
    %v208 = vand.u32 %v48, 4294901760
    %v209 = vsub.f32 %v48, %v208
    %v210 = vand.u32 %v209, 4294901760
    %v211 = vsub.f32 %v209, %v210
    %v212 = vand.u32 %v211, 4294901760
    %213 = vmatpush.xpose.msra.mxu0 %v212
    %v214 = vand.u32 %v45, 4294901760
    %v215 = vsub.f32 %v45, %v214
    %v216 = vand.u32 %v215, 4294901760
    %v217 = vsub.f32 %v215, %v216
    %v218 = vand.u32 %v217, 4294901760
    %219 = vmatpush.xpose.msra.mxu0 %v218
    %v220 = vand.u32 %v42, 4294901760
    %v221 = vsub.f32 %v42, %v220
    %v222 = vand.u32 %v221, 4294901760
    %v223 = vsub.f32 %v221, %v222
    %v224 = vand.u32 %v223, 4294901760
    %225 = vmatpush.xpose.msra.mxu0 %v224
    %v226 = vand.u32 %v39, 4294901760
    %227 = vmatmul.f32.gmra.mxu0 %v226
    %v228 = vpop.f32.mrf.mxu0
    %v229 = vadd.f32 %v128, %v228
    %230 = vdwg.mxu0
    %v231 = vand.u32 %v87, 4294901760
    %v232 = vsub.f32 %v87, %v231
    %233 = vmatpush.xpose.msra.mxu0 %v232
    %v234 = vand.u32 %v84, 4294901760
    %v235 = vsub.f32 %v84, %v234
    %236 = vmatpush.xpose.msra.mxu0 %v235
    %v237 = vand.u32 %v81, 4294901760
    %v238 = vsub.f32 %v81, %v237
    %239 = vmatpush.xpose.msra.mxu0 %v238
    %v240 = vand.u32 %v78, 4294901760
    %v241 = vsub.f32 %v78, %v240
    %242 = vmatpush.xpose.msra.mxu0 %v241
    %v243 = vand.u32 %v75, 4294901760
    %v244 = vsub.f32 %v75, %v243
    %245 = vmatpush.xpose.msra.mxu0 %v244
    %v246 = vand.u32 %v72, 4294901760
    %v247 = vsub.f32 %v72, %v246
    %248 = vmatpush.xpose.msra.mxu0 %v247
    %v249 = vand.u32 %v69, 4294901760
    %v250 = vsub.f32 %v69, %v249
    %251 = vmatpush.xpose.msra.mxu0 %v250
    %v252 = vand.u32 %v66, 4294901760
    %v253 = vsub.f32 %v66, %v252
    %254 = vmatpush.xpose.msra.mxu0 %v253
    %v255 = vand.u32 %v63, 4294901760
    %v256 = vsub.f32 %v63, %v255
    %257 = vmatpush.xpose.msra.mxu0 %v256
    %v258 = vand.u32 %v60, 4294901760
    %v259 = vsub.f32 %v60, %v258
    %260 = vmatpush.xpose.msra.mxu0 %v259
    %v261 = vand.u32 %v57, 4294901760
    %v262 = vsub.f32 %v57, %v261
    %263 = vmatpush.xpose.msra.mxu0 %v262
    %v264 = vand.u32 %v54, 4294901760
    %v265 = vsub.f32 %v54, %v264
    %266 = vmatpush.xpose.msra.mxu0 %v265
    %v267 = vand.u32 %v51, 4294901760
    %v268 = vsub.f32 %v51, %v267
    %269 = vmatpush.xpose.msra.mxu0 %v268
    %v270 = vand.u32 %v48, 4294901760
    %v271 = vsub.f32 %v48, %v270
    %272 = vmatpush.xpose.msra.mxu0 %v271
    %v273 = vand.u32 %v45, 4294901760
    %v274 = vsub.f32 %v45, %v273
    %275 = vmatpush.xpose.msra.mxu0 %v274
    %v276 = vand.u32 %v42, 4294901760
    %v277 = vsub.f32 %v42, %v276
    %278 = vmatpush.xpose.msra.mxu0 %v277
    %v279 = vand.u32 %v39, 4294901760
    %v280 = vsub.f32 %v39, %v279
    %281 = vmatmul.f32.gmra.mxu0 %v280
    %v282 = vpop.f32.mrf.mxu0
    %v283 = vadd.f32 %v229, %v282
    %284 = vdwg.mxu0
    %v285 = vand.u32 %v87, 4294901760
    %286 = vmatpush.xpose.msra.mxu0 %v285
    %v287 = vand.u32 %v84, 4294901760
    %288 = vmatpush.xpose.msra.mxu0 %v287
    %v289 = vand.u32 %v81, 4294901760
    %290 = vmatpush.xpose.msra.mxu0 %v289
    %v291 = vand.u32 %v78, 4294901760
    %292 = vmatpush.xpose.msra.mxu0 %v291
    %v293 = vand.u32 %v75, 4294901760
    %294 = vmatpush.xpose.msra.mxu0 %v293
    %v295 = vand.u32 %v72, 4294901760
    %296 = vmatpush.xpose.msra.mxu0 %v295
    %v297 = vand.u32 %v69, 4294901760
    %298 = vmatpush.xpose.msra.mxu0 %v297
    %v299 = vand.u32 %v66, 4294901760
    %300 = vmatpush.xpose.msra.mxu0 %v299
    %v301 = vand.u32 %v63, 4294901760
    %302 = vmatpush.xpose.msra.mxu0 %v301
    %v303 = vand.u32 %v60, 4294901760
    %304 = vmatpush.xpose.msra.mxu0 %v303
    %v305 = vand.u32 %v57, 4294901760
    %306 = vmatpush.xpose.msra.mxu0 %v305
    %v307 = vand.u32 %v54, 4294901760
    %308 = vmatpush.xpose.msra.mxu0 %v307
    %v309 = vand.u32 %v51, 4294901760
    %310 = vmatpush.xpose.msra.mxu0 %v309
    %v311 = vand.u32 %v48, 4294901760
    %312 = vmatpush.xpose.msra.mxu0 %v311
    %v313 = vand.u32 %v45, 4294901760
    %314 = vmatpush.xpose.msra.mxu0 %v313
    %v315 = vand.u32 %v42, 4294901760
    %316 = vmatpush.xpose.msra.mxu0 %v315
    %v317 = vand.u32 %v39, 4294901760
    %v318 = vsub.f32 %v39, %v317
    %v319 = vand.u32 %v318, 4294901760
    %320 = vmatmul.f32.gmra.mxu0 %v319
    %v321 = vpop.f32.mrf.mxu0
    %v322 = vadd.f32 %v283, %v321
    %323 = vdwg.mxu0
    %v324 = vand.u32 %v87, 4294901760
    %v325 = vsub.f32 %v87, %v324
    %v326 = vand.u32 %v325, 4294901760
    %327 = vmatpush.xpose.msra.mxu0 %v326
    %v328 = vand.u32 %v84, 4294901760
    %v329 = vsub.f32 %v84, %v328
    %v330 = vand.u32 %v329, 4294901760
    %331 = vmatpush.xpose.msra.mxu0 %v330
    %v332 = vand.u32 %v81, 4294901760
    %v333 = vsub.f32 %v81, %v332
    %v334 = vand.u32 %v333, 4294901760
    %335 = vmatpush.xpose.msra.mxu0 %v334
    %v336 = vand.u32 %v78, 4294901760
    %v337 = vsub.f32 %v78, %v336
    %v338 = vand.u32 %v337, 4294901760
    %339 = vmatpush.xpose.msra.mxu0 %v338
    %v340 = vand.u32 %v75, 4294901760
    %v341 = vsub.f32 %v75, %v340
    %v342 = vand.u32 %v341, 4294901760
    %343 = vmatpush.xpose.msra.mxu0 %v342
    %v344 = vand.u32 %v72, 4294901760
    %v345 = vsub.f32 %v72, %v344
    %v346 = vand.u32 %v345, 4294901760
    %347 = vmatpush.xpose.msra.mxu0 %v346
    %v348 = vand.u32 %v69, 4294901760
    %v349 = vsub.f32 %v69, %v348
    %v350 = vand.u32 %v349, 4294901760
    %351 = vmatpush.xpose.msra.mxu0 %v350
    %v352 = vand.u32 %v66, 4294901760
    %v353 = vsub.f32 %v66, %v352
    %v354 = vand.u32 %v353, 4294901760
    %355 = vmatpush.xpose.msra.mxu0 %v354
    %v356 = vand.u32 %v63, 4294901760
    %v357 = vsub.f32 %v63, %v356
    %v358 = vand.u32 %v357, 4294901760
    %359 = vmatpush.xpose.msra.mxu0 %v358
    %v360 = vand.u32 %v60, 4294901760
    %v361 = vsub.f32 %v60, %v360
    %v362 = vand.u32 %v361, 4294901760
    %363 = vmatpush.xpose.msra.mxu0 %v362
    %v364 = vand.u32 %v57, 4294901760
    %v365 = vsub.f32 %v57, %v364
    %v366 = vand.u32 %v365, 4294901760
    %367 = vmatpush.xpose.msra.mxu0 %v366
    %v368 = vand.u32 %v54, 4294901760
    %v369 = vsub.f32 %v54, %v368
    %v370 = vand.u32 %v369, 4294901760
    %371 = vmatpush.xpose.msra.mxu0 %v370
    %v372 = vand.u32 %v51, 4294901760
    %v373 = vsub.f32 %v51, %v372
    %v374 = vand.u32 %v373, 4294901760
    %375 = vmatpush.xpose.msra.mxu0 %v374
    %v376 = vand.u32 %v48, 4294901760
    %v377 = vsub.f32 %v48, %v376
    %v378 = vand.u32 %v377, 4294901760
    %379 = vmatpush.xpose.msra.mxu0 %v378
    %v380 = vand.u32 %v45, 4294901760
    %v381 = vsub.f32 %v45, %v380
    %v382 = vand.u32 %v381, 4294901760
    %383 = vmatpush.xpose.msra.mxu0 %v382
    %v384 = vand.u32 %v42, 4294901760
    %v385 = vsub.f32 %v42, %v384
    %v386 = vand.u32 %v385, 4294901760
    %387 = vmatpush.xpose.msra.mxu0 %v386
    %v388 = vand.u32 %v39, 4294901760
    %389 = vmatmul.f32.gmra.mxu0 %v388
    %v390 = vpop.f32.mrf.mxu0
    %v391 = vadd.f32 %v322, %v390
    %392 = vdwg.mxu0
    %v393 = vand.u32 %v87, 4294901760
    %394 = vmatpush.xpose.msra.mxu0 %v393
    %v395 = vand.u32 %v84, 4294901760
    %396 = vmatpush.xpose.msra.mxu0 %v395
    %v397 = vand.u32 %v81, 4294901760
    %398 = vmatpush.xpose.msra.mxu0 %v397
    %v399 = vand.u32 %v78, 4294901760
    %400 = vmatpush.xpose.msra.mxu0 %v399
    %v401 = vand.u32 %v75, 4294901760
    %402 = vmatpush.xpose.msra.mxu0 %v401
    %v403 = vand.u32 %v72, 4294901760
    %404 = vmatpush.xpose.msra.mxu0 %v403
    %v405 = vand.u32 %v69, 4294901760
    %406 = vmatpush.xpose.msra.mxu0 %v405
    %v407 = vand.u32 %v66, 4294901760
    %408 = vmatpush.xpose.msra.mxu0 %v407
    %v409 = vand.u32 %v63, 4294901760
    %410 = vmatpush.xpose.msra.mxu0 %v409
    %v411 = vand.u32 %v60, 4294901760
    %412 = vmatpush.xpose.msra.mxu0 %v411
    %v413 = vand.u32 %v57, 4294901760
    %414 = vmatpush.xpose.msra.mxu0 %v413
    %v415 = vand.u32 %v54, 4294901760
    %416 = vmatpush.xpose.msra.mxu0 %v415
    %v417 = vand.u32 %v51, 4294901760
    %418 = vmatpush.xpose.msra.mxu0 %v417
    %v419 = vand.u32 %v48, 4294901760
    %420 = vmatpush.xpose.msra.mxu0 %v419
    %v421 = vand.u32 %v45, 4294901760
    %422 = vmatpush.xpose.msra.mxu0 %v421
    %v423 = vand.u32 %v42, 4294901760
    %424 = vmatpush.xpose.msra.mxu0 %v423
    %v425 = vand.u32 %v39, 4294901760
    %426 = vmatmul.f32.gmra.mxu0 %v425
    %v427 = vpop.f32.mrf.mxu0
    %v428 = vadd.f32 %v391, %v427
    %429 = vdwg.mxu0
    %v431 = vperm.slane %v32, 0
    %v433 = vadd.f32 %v37, %v431
    %v434 = vmul.f32 %v428, 2.0
    %v435 = vsub.f32 %v433, %v434
    %v436 = vmax.f32 %v435, 0.0
    %v437 = vadd.f32 %v436, 1.0
    %v438 = vrcp.pop %v437
    %v439 = vmul.f32 %v437, %v438
    %v440 = vsub.f32 1.0, %v439
    %v441 = vmul.f32 %v438, %v440
    %v442 = vadd.f32 %v438, %v441
    %vm443 = vweird.f32 %v437
    %vm444 = vweird.f32 %v438
    %vm445 = vmor %vm443, %vm444
    %v446 = vsel %vm445, %v438, %v442
    %v447 = vand.u32 2147483647, %v437
    %vm448 = vcmp.eq.f32.partialorder %v447, 8.507059e+37
    %v449 = vand.u32 %v437, 2147483648
    %v450 = vor.u32 1.1754944e-38, %v449
    %v451 = vsel %vm448, %v450, %v446
    %452 = vadd.xlane.f32.xlu0 %v451
    %v453 = vpop.xlane.xlu0 %452
    %v454 = vrcp.pop %v453
    %v455 = vmul.f32 %v453, %v454
    %v456 = vsub.f32 1.0, %v455
    %v457 = vmul.f32 %v454, %v456
    %v458 = vadd.f32 %v454, %v457
    %vm459 = vweird.f32 %v453
    %vm460 = vweird.f32 %v454
    %vm461 = vmor %vm459, %vm460
    %v462 = vsel %vm461, %v454, %v458
    %v463 = vand.u32 2147483647, %v453
    %vm464 = vcmp.eq.f32.partialorder %v463, 8.507059e+37
    %v465 = vand.u32 %v453, 2147483648
    %v466 = vor.u32 1.1754944e-38, %v465
    %v467 = vsel %vm464, %v466, %v462
    %v468 = vmul.f32 %v451, %v467
    %469 = vst [vmem:[#allocation2] sm:$0xff] %v468
    // Predicated region
    $region14: #{tpu_custom_call.1} parent=1 // pred_check
      _
    $region15: #{tpu_custom_call.1} parent=1 // pred_check_branch
      %471 = sbr.rel (0) target = $region17
    $region16: #{tpu_custom_call.1} parent=1 // pred_region
      %473 = vsyncadd [#allocation3], 0
      %s475 = sshll.u32 [#allocation2], 4
      %s476 = int_to_ptr.vmem [resolvable:$true] %s475
      %s477 = sshll.u32 %s3, 4
      %s478 = int_to_ptr.hbm [resolvable:$true] %s477
      %480 = dma.vmem_to_hbm [thread:$0]  %s476, 128, %s478, [#allocation3]
    $region17: #{tpu_custom_call.1} parent=1 // pred_fallthru
      _
    // Predicated region
    $region18: #{tpu_custom_call.1} parent=1 // pred_check
      _
    $region19: #{tpu_custom_call.1} parent=1 // pred_check_branch
      %482 = sbr.rel (0) target = $region21
    $region20: #{tpu_custom_call.1} parent=1 // pred_region
      %484 = dma.done [#allocation3], 128
    $region21: #{tpu_custom_call.1} parent=1 // pred_fallthru
      _
    %485 = vsyncpa [#allocation3], 1

</llo_original>
